<compile_context>
chip_gen: v7x
topology: tpu7x:2x2x1
jax: 0.10.0
libtpu: 0.0.40
codegen_flags: <defaults>
</compile_context>

<pallas_src>
from functools import partial

import jax
import jax.numpy as jnp
import numpy as np
from jax.experimental import pallas as pl
from jax.experimental.pallas import tpu as pltpu

EPS = 1e-5                      # torch.nn.GroupNorm default
_VMEM_LIMIT = 32 * 1024 * 1024  # > v5e's 16 MiB default scoped VMEM, safe on all gens


def _scale_shift(s1, s2, gamma, beta, num_groups, n_per_group):
    """Per-channel GroupNorm scale/shift from channel sums.

    s1, s2, gamma, beta: (C, 1) float32.  The group reduce runs on the tiny
    per-channel sums (NOT on the (C, HW) data), so the unrolled loop is only
    O(num_groups) scalar work.
    """
    C = s1.shape[0]
    gsize = C // num_groups
    inv_n = 1.0 / float(n_per_group)
    scale_parts, shift_parts = [], []
    for g in range(num_groups):                      # static & tiny
        lo = g * gsize
        mean = jnp.sum(s1[lo:lo + gsize, :], axis=0, keepdims=True) * inv_n   # (1, 1)
        ex2 = jnp.sum(s2[lo:lo + gsize, :], axis=0, keepdims=True) * inv_n
        rstd = jax.lax.rsqrt(ex2 - mean * mean + EPS)      # biased var (torch GroupNorm)
        g_scale = gamma[lo:lo + gsize, :] * rstd           # (gsize, 1)
        g_shift = beta[lo:lo + gsize, :] - mean * g_scale
        scale_parts.append(g_scale)
        shift_parts.append(g_shift)
    return (jnp.concatenate(scale_parts, axis=0),          # (C, 1)
            jnp.concatenate(shift_parts, axis=0))


def prenorm_fused_kernel(x_ref, gamma_ref, beta_ref, w_ref, b_ref, o_ref, *,
                         num_groups, n_per_group):
    """One-read path: stats + normalize + 1x1 conv on a full (C, HWp) sample."""
    x = x_ref[0].astype(jnp.float32)                       # (C, HWp)
    s1 = jnp.sum(x, axis=-1, keepdims=True)                # (C, 1)
    s2 = jnp.sum(x * x, axis=-1, keepdims=True)
    scale, shift = _scale_shift(s1, s2,
                                gamma_ref[...].astype(jnp.float32),
                                beta_ref[...].astype(jnp.float32),
                                num_groups, n_per_group)
    y = x * scale + shift                                  # single fused normalize+affine
    out = jnp.dot(w_ref[...].astype(jnp.float32), y,
                  preferred_element_type=jnp.float32)      # MXU; HW stays on lanes
    o_ref[0] = (out + b_ref[...].astype(jnp.float32)).astype(o_ref.dtype)


def prenorm_stats_kernel(x_ref, s1_ref, s2_ref):
    """Pass 1 of the tiled path: streaming per-channel sum / sum-of-squares."""
    @pl.when(pl.program_id(1) == 0)
    def _():
        s1_ref[...] = jnp.zeros_like(s1_ref)
        s2_ref[...] = jnp.zeros_like(s2_ref)

    x = x_ref[0].astype(jnp.float32)                       # (C, thw)
    s1_ref[0] = s1_ref[0] + jnp.sum(x, axis=-1, keepdims=True)
    s2_ref[0] = s2_ref[0] + jnp.sum(x * x, axis=-1, keepdims=True)


def prenorm_apply_kernel(x_ref, s1_ref, s2_ref, gamma_ref, beta_ref, w_ref,
                         b_ref, o_ref, *, num_groups, n_per_group):
    """Pass 2 of the tiled path: scale/shift + 1x1-conv matmul per HW tile."""
    scale, shift = _scale_shift(s1_ref[0], s2_ref[0],
                                gamma_ref[...].astype(jnp.float32),
                                beta_ref[...].astype(jnp.float32),
                                num_groups, n_per_group)
    y = x_ref[0].astype(jnp.float32) * scale + shift       # (C, thw)
    out = jnp.dot(w_ref[...].astype(jnp.float32), y,
                  preferred_element_type=jnp.float32)
    o_ref[0] = (out + b_ref[...].astype(jnp.float32)).astype(o_ref.dtype)


def _pick_hw_tile(hwp, cap):
    """Largest multiple of 128 that divides hwp and is <= cap."""
    best, t = 128, 128
    while t <= min(hwp, cap):
        if hwp % t == 0:
            best = t
        t += 128
    return best


def prenorm_conv1x1(x, gamma, beta, w, b, *, hw_tile_cap=2048,
                    force_two_pass=False):
    """PreNorm(dim, Conv2d(dim, dim, 1)) forward.  x: (B, C, H, W) NCHW."""
    B, C, H, W = x.shape
    num_groups = C // 4 if C % 4 == 0 else C
    gsize = C // num_groups
    HW = H * W
    HWp = ((HW + 127) // 128) * 128         # lane-align: unmasked vector stores
    xf = x.reshape(B, C, HW)
    if HWp != HW:
        xf = jnp.pad(xf, ((0, 0), (0, 0), (0, HWp - HW)))  # zeros: add 0 to sums

    gamma2 = jnp.asarray(gamma, jnp.float32).reshape(C, 1)
    beta2 = jnp.asarray(beta, jnp.float32).reshape(C, 1)
    b2 = jnp.asarray(b, jnp.float32).reshape(C, 1)
    w2 = jnp.asarray(w)
    n_per_group = gsize * HW                # true count (padding excluded)

    if not force_two_pass and HWp <= hw_tile_cap:
        # Whole sample fits one VMEM tile -> fuse everything, read x once.
        out = pl.pallas_call(
            partial(prenorm_fused_kernel, num_groups=num_groups,
                    n_per_group=n_per_group),
            out_shape=jax.ShapeDtypeStruct((B, C, HWp), x.dtype),
            grid_spec=pltpu.PrefetchScalarGridSpec(
                num_scalar_prefetch=0,
                grid=(B,),
                in_specs=[
                    pl.BlockSpec((1, C, HWp), lambda bb: (bb, 0, 0)),   # x
                    pl.BlockSpec((C, 1), lambda bb: (0, 0)),            # gamma
                    pl.BlockSpec((C, 1), lambda bb: (0, 0)),            # beta
                    pl.BlockSpec((C, C), lambda bb: (0, 0)),            # conv weight
                    pl.BlockSpec((C, 1), lambda bb: (0, 0)),            # conv bias
                ],
                out_specs=pl.BlockSpec((1, C, HWp), lambda bb: (bb, 0, 0)),
            ),
            compiler_params=pltpu.CompilerParams(
                dimension_semantics=("parallel",),
                vmem_limit_bytes=_VMEM_LIMIT),
        )(xf, gamma2, beta2, w2, b2)
    else:
        thw = _pick_hw_tile(HWp, hw_tile_cap)
        n_hw = HWp // thw

        # Pass 1: streaming reduction over HW tiles (reduction axis last /
        # "arbitrary"; accumulator lives in the revisited output block).
        s1, s2 = pl.pallas_call(
            prenorm_stats_kernel,
            out_shape=(jax.ShapeDtypeStruct((B, C, 1), jnp.float32),
                       jax.ShapeDtypeStruct((B, C, 1), jnp.float32)),
            grid_spec=pltpu.PrefetchScalarGridSpec(
                num_scalar_prefetch=0,
                grid=(B, n_hw),
                in_specs=[pl.BlockSpec((1, C, thw), lambda bb, hh: (bb, 0, hh))],
                out_specs=[pl.BlockSpec((1, C, 1), lambda bb, hh: (bb, 0, 0)),
                           pl.BlockSpec((1, C, 1), lambda bb, hh: (bb, 0, 0))],
            ),
            compiler_params=pltpu.CompilerParams(
                dimension_semantics=("parallel", "arbitrary"),
                vmem_limit_bytes=_VMEM_LIMIT),
        )(xf)

        # Pass 2: fully parallel (B, HW-tile) grid -> megacore-friendly on v7x.
        out = pl.pallas_call(
            partial(prenorm_apply_kernel, num_groups=num_groups,
                    n_per_group=n_per_group),
            out_shape=jax.ShapeDtypeStruct((B, C, HWp), x.dtype),
            grid_spec=pltpu.PrefetchScalarGridSpec(
                num_scalar_prefetch=0,
                grid=(B, n_hw),
                in_specs=[
                    pl.BlockSpec((1, C, thw), lambda bb, hh: (bb, 0, hh)),  # x
                    pl.BlockSpec((1, C, 1), lambda bb, hh: (bb, 0, 0)),     # s1
                    pl.BlockSpec((1, C, 1), lambda bb, hh: (bb, 0, 0)),     # s2
                    pl.BlockSpec((C, 1), lambda bb, hh: (0, 0)),            # gamma
                    pl.BlockSpec((C, 1), lambda bb, hh: (0, 0)),            # beta
                    pl.BlockSpec((C, C), lambda bb, hh: (0, 0)),            # conv weight
                    pl.BlockSpec((C, 1), lambda bb, hh: (0, 0)),            # conv bias
                ],
                out_specs=pl.BlockSpec((1, C, thw), lambda bb, hh: (bb, 0, hh)),
            ),
            compiler_params=pltpu.CompilerParams(
                dimension_semantics=("parallel", "parallel"),
                vmem_limit_bytes=_VMEM_LIMIT),
        )(xf, s1, s2, gamma2, beta2, w2, b2)

    if HWp != HW:
        out = out[:, :, :HW]
    return out.reshape(B, C, H, W)


def prenorm_ref(x, gamma, beta, w, b):
    """Pure-JAX reference matching torch GroupNorm + 1x1 conv."""
    B, C, H, W = x.shape
    num_groups = C // 4 if C % 4 == 0 else C
    xg = x.reshape(B, num_groups, C // num_groups, H, W).astype(jnp.float32)
    mean = xg.mean(axis=(2, 3, 4), keepdims=True)
    var = ((xg - mean) ** 2).mean(axis=(2, 3, 4), keepdims=True)
    xn = ((xg - mean) / jnp.sqrt(var + EPS)).reshape(B, C, H, W)
    y = xn * gamma.reshape(1, C, 1, 1) + beta.reshape(1, C, 1, 1)
    return jnp.einsum('oc,bchw->bohw', w, y) + b.reshape(1, C, 1, 1)


if __name__ == "__main__":
    key = jax.random.PRNGKey(0)
    kx, kg, kb, kw, kc = jax.random.split(key, 5)

    B, C, H, W = 2, 8, 16, 16          # dim=8 -> num_groups=2
    x = jax.random.normal(kx, (B, C, H, W), dtype=jnp.float32)
    gamma = jax.random.normal(kg, (C,), dtype=jnp.float32)
    beta = jax.random.normal(kb, (C,), dtype=jnp.float32)
    w = jax.random.normal(kw, (C, C), dtype=jnp.float32) * 0.1   # 1x1 conv weight
    b = jax.random.normal(kc, (C,), dtype=jnp.float32) * 0.1     # 1x1 conv bias

    ref = prenorm_ref(x, gamma, beta, w, b)

    # fused one-read path (sample fits a single VMEM tile)
    out_fused = jax.block_until_ready(prenorm_conv1x1(x, gamma, beta, w, b))
    np.testing.assert_allclose(np.asarray(out_fused), np.asarray(ref),
                               rtol=1e-4, atol=1e-4)

    # tiled two-pass path (stats pass + matmul pass over 128-lane HW tiles)
    out_tiled = jax.block_until_ready(
        prenorm_conv1x1(x, gamma, beta, w, b,
                        force_two_pass=True, hw_tile_cap=128))
    np.testing.assert_allclose(np.asarray(out_tiled), np.asarray(ref),
                               rtol=1e-4, atol=1e-4)

    print("KERNEL_OK")
</pallas_src>

<mosaic_0001>
module attributes {stable_mosaic.version = 11 : i64} {
  func.func @prenorm_fused_kernel(%arg0: i32, %arg1: memref<1x8x256xf32, #tpu.memory_space<vmem>>, %arg2: memref<8x1xf32, #tpu.memory_space<vmem>>, %arg3: memref<8x1xf32, #tpu.memory_space<vmem>>, %arg4: memref<8x8xf32, #tpu.memory_space<vmem>>, %arg5: memref<8x1xf32, #tpu.memory_space<vmem>>, %arg6: memref<1x8x256xf32, #tpu.memory_space<vmem>>) attributes {dimension_semantics = [#tpu.dimension_semantics<parallel>], iteration_bounds = array<i64: 2>, scalar_prefetch = 0 : i64, scratch_operands = 0 : i64, tpu.core_type = #tpu.core_type<tc>, window_params = [{transform_indices = @transform_0, window_bounds = array<i64: 1, 8, 256>}, {pipeline_mode = #tpu.pipeline_mode<synchronous>, transform_indices = @transform_1, window_bounds = array<i64: 8, 1>}, {pipeline_mode = #tpu.pipeline_mode<synchronous>, transform_indices = @transform_2, window_bounds = array<i64: 8, 1>}, {pipeline_mode = #tpu.pipeline_mode<synchronous>, transform_indices = @transform_3, window_bounds = array<i64: 8, 8>}, {pipeline_mode = #tpu.pipeline_mode<synchronous>, transform_indices = @transform_4, window_bounds = array<i64: 8, 1>}, {transform_indices = @transform_5, window_bounds = array<i64: 1, 8, 256>}]} {
    %c0 = arith.constant 0 : index
    %c0_0 = arith.constant 0 : index
    %c0_1 = arith.constant 0 : index
    %0 = vector.load %arg1[%c0, %c0_0, %c0_1] : memref<1x8x256xf32, #tpu.memory_space<vmem>>, vector<1x8x256xf32>
    %1 = vector.shape_cast %0 : vector<1x8x256xf32> to vector<8x256xf32>
    %cst = arith.constant dense<0.000000e+00> : vector<8xf32>
    %2 = vector.multi_reduction <add>, %1, %cst [1] : vector<8x256xf32> to vector<8xf32>
    %3 = vector.shape_cast %2 : vector<8xf32> to vector<8x1xf32>
    %4 = arith.mulf %1, %1 : vector<8x256xf32>
    %cst_2 = arith.constant dense<0.000000e+00> : vector<8xf32>
    %5 = vector.multi_reduction <add>, %4, %cst_2 [1] : vector<8x256xf32> to vector<8xf32>
    %6 = vector.shape_cast %5 : vector<8xf32> to vector<8x1xf32>
    %c0_3 = arith.constant 0 : index
    %c0_4 = arith.constant 0 : index
    %7 = vector.load %arg2[%c0_3, %c0_4] : memref<8x1xf32, #tpu.memory_space<vmem>>, vector<8x1xf32>
    %c0_5 = arith.constant 0 : index
    %c0_6 = arith.constant 0 : index
    %8 = vector.load %arg3[%c0_5, %c0_6] : memref<8x1xf32, #tpu.memory_space<vmem>>, vector<8x1xf32>
    %9 = vector.extract_strided_slice %3 {offsets = [0, 0], sizes = [4, 1], strides = [1, 1]} : vector<8x1xf32> to vector<4x1xf32>
    %cst_7 = arith.constant dense<0.000000e+00> : vector<1xf32>
    %10 = vector.multi_reduction <add>, %9, %cst_7 [0] : vector<4x1xf32> to vector<1xf32>
    %11 = vector.shape_cast %10 : vector<1xf32> to vector<1x1xf32>
    %cst_8 = arith.constant 9.765625E-4 : f32
    %12 = vector.broadcast %cst_8 : f32 to vector<1x1xf32>
    %13 = arith.mulf %11, %12 : vector<1x1xf32>
    %14 = vector.extract_strided_slice %6 {offsets = [0, 0], sizes = [4, 1], strides = [1, 1]} : vector<8x1xf32> to vector<4x1xf32>
    %cst_9 = arith.constant dense<0.000000e+00> : vector<1xf32>
    %15 = vector.multi_reduction <add>, %14, %cst_9 [0] : vector<4x1xf32> to vector<1xf32>
    %16 = vector.shape_cast %15 : vector<1xf32> to vector<1x1xf32>
    %cst_10 = arith.constant 9.765625E-4 : f32
    %17 = vector.broadcast %cst_10 : f32 to vector<1x1xf32>
    %18 = arith.mulf %16, %17 : vector<1x1xf32>
    %19 = arith.mulf %13, %13 : vector<1x1xf32>
    %20 = arith.subf %18, %19 : vector<1x1xf32>
    %cst_11 = arith.constant 9.99999974E-6 : f32
    %21 = vector.broadcast %cst_11 : f32 to vector<1x1xf32>
    %22 = arith.addf %20, %21 : vector<1x1xf32>
    %23 = math.rsqrt %22 : vector<1x1xf32>
    %24 = vector.extract_strided_slice %7 {offsets = [0, 0], sizes = [4, 1], strides = [1, 1]} : vector<8x1xf32> to vector<4x1xf32>
    %25 = vector.broadcast %23 : vector<1x1xf32> to vector<4x1xf32>
    %26 = arith.mulf %24, %25 : vector<4x1xf32>
    %27 = vector.extract_strided_slice %8 {offsets = [0, 0], sizes = [4, 1], strides = [1, 1]} : vector<8x1xf32> to vector<4x1xf32>
    %28 = vector.broadcast %13 : vector<1x1xf32> to vector<4x1xf32>
    %29 = arith.mulf %28, %26 : vector<4x1xf32>
    %30 = arith.subf %27, %29 : vector<4x1xf32>
    %31 = vector.extract_strided_slice %3 {offsets = [4, 0], sizes = [4, 1], strides = [1, 1]} : vector<8x1xf32> to vector<4x1xf32>
    %cst_12 = arith.constant dense<0.000000e+00> : vector<1xf32>
    %32 = vector.multi_reduction <add>, %31, %cst_12 [0] : vector<4x1xf32> to vector<1xf32>
    %33 = vector.shape_cast %32 : vector<1xf32> to vector<1x1xf32>
    %cst_13 = arith.constant 9.765625E-4 : f32
    %34 = vector.broadcast %cst_13 : f32 to vector<1x1xf32>
    %35 = arith.mulf %33, %34 : vector<1x1xf32>
    %36 = vector.extract_strided_slice %6 {offsets = [4, 0], sizes = [4, 1], strides = [1, 1]} : vector<8x1xf32> to vector<4x1xf32>
    %cst_14 = arith.constant dense<0.000000e+00> : vector<1xf32>
    %37 = vector.multi_reduction <add>, %36, %cst_14 [0] : vector<4x1xf32> to vector<1xf32>
    %38 = vector.shape_cast %37 : vector<1xf32> to vector<1x1xf32>
    %cst_15 = arith.constant 9.765625E-4 : f32
    %39 = vector.broadcast %cst_15 : f32 to vector<1x1xf32>
    %40 = arith.mulf %38, %39 : vector<1x1xf32>
    %41 = arith.mulf %35, %35 : vector<1x1xf32>
    %42 = arith.subf %40, %41 : vector<1x1xf32>
    %cst_16 = arith.constant 9.99999974E-6 : f32
    %43 = vector.broadcast %cst_16 : f32 to vector<1x1xf32>
    %44 = arith.addf %42, %43 : vector<1x1xf32>
    %45 = math.rsqrt %44 : vector<1x1xf32>
    %46 = vector.extract_strided_slice %7 {offsets = [4, 0], sizes = [4, 1], strides = [1, 1]} : vector<8x1xf32> to vector<4x1xf32>
    %47 = vector.broadcast %45 : vector<1x1xf32> to vector<4x1xf32>
    %48 = arith.mulf %46, %47 : vector<4x1xf32>
    %49 = vector.extract_strided_slice %8 {offsets = [4, 0], sizes = [4, 1], strides = [1, 1]} : vector<8x1xf32> to vector<4x1xf32>
    %50 = vector.broadcast %35 : vector<1x1xf32> to vector<4x1xf32>
    %51 = arith.mulf %50, %48 : vector<4x1xf32>
    %52 = arith.subf %49, %51 : vector<4x1xf32>
    %53 = tpu.concatenate %26, %48 in 0 : vector<4x1xf32>, vector<4x1xf32> -> vector<8x1xf32>
    %54 = tpu.concatenate %30, %52 in 0 : vector<4x1xf32>, vector<4x1xf32> -> vector<8x1xf32>
    %55 = vector.broadcast %53 : vector<8x1xf32> to vector<8x256xf32>
    %56 = arith.mulf %1, %55 : vector<8x256xf32>
    %57 = vector.broadcast %54 : vector<8x1xf32> to vector<8x256xf32>
    %58 = arith.addf %56, %57 : vector<8x256xf32>
    %c0_17 = arith.constant 0 : index
    %c0_18 = arith.constant 0 : index
    %59 = vector.load %arg4[%c0_17, %c0_18] : memref<8x8xf32, #tpu.memory_space<vmem>>, vector<8x8xf32>
    %cst_19 = arith.constant dense<0.000000e+00> : vector<8x256xf32>
    %60 = tpu.matmul %59, %58, %cst_19 {dimension_numbers = #tpu.dot_dimension_numbers<[1], [0], [0], [1], [0, 0, 1, 1], [], []>} : vector<8x8xf32>, vector<8x256xf32>, vector<8x256xf32> -> vector<8x256xf32>
    %c0_20 = arith.constant 0 : index
    %c0_21 = arith.constant 0 : index
    %61 = vector.load %arg5[%c0_20, %c0_21] : memref<8x1xf32, #tpu.memory_space<vmem>>, vector<8x1xf32>
    %62 = vector.broadcast %61 : vector<8x1xf32> to vector<8x256xf32>
    %63 = arith.addf %60, %62 : vector<8x256xf32>
    %c0_22 = arith.constant 0 : index
    %c0_23 = arith.constant 0 : index
    %c0_24 = arith.constant 0 : index
    %64 = vector.load %arg6[%c0_22, %c0_23, %c0_24] : memref<1x8x256xf32, #tpu.memory_space<vmem>>, vector<1x8x256xf32>
    %65 = vector.shape_cast %64 : vector<1x8x256xf32> to vector<8x256xf32>
    %66 = vector.shape_cast %63 : vector<8x256xf32> to vector<1x8x256xf32>
    tpu.vector_store %arg6[%c0_22, %c0_23, %c0_24], %66 {strides = array<i32>} : memref<1x8x256xf32, #tpu.memory_space<vmem>>, vector<1x8x256xf32>,
    return
  }
  func.func @transform_0(%arg0: i32) -> (i32, i32, i32) {
    %c0_i32 = arith.constant 0 : i32
    %c0_i32_0 = arith.constant 0 : i32
    %c0_i32_1 = arith.constant 0 : i32
    return %arg0, %c0_i32, %c0_i32_0 : i32, i32, i32
  }
  func.func @transform_1(%arg0: i32) -> (i32, i32) {
    %c0_i32 = arith.constant 0 : i32
    %c0_i32_0 = arith.constant 0 : i32
    %c0_i32_1 = arith.constant 0 : i32
    return %c0_i32, %c0_i32_0 : i32, i32
  }
  func.func @transform_2(%arg0: i32) -> (i32, i32) {
    %c0_i32 = arith.constant 0 : i32
    %c0_i32_0 = arith.constant 0 : i32
    %c0_i32_1 = arith.constant 0 : i32
    return %c0_i32, %c0_i32_0 : i32, i32
  }
  func.func @transform_3(%arg0: i32) -> (i32, i32) {
    %c0_i32 = arith.constant 0 : i32
    %c0_i32_0 = arith.constant 0 : i32
    %c0_i32_1 = arith.constant 0 : i32
    return %c0_i32, %c0_i32_0 : i32, i32
  }
  func.func @transform_4(%arg0: i32) -> (i32, i32) {
    %c0_i32 = arith.constant 0 : i32
    %c0_i32_0 = arith.constant 0 : i32
    %c0_i32_1 = arith.constant 0 : i32
    return %c0_i32, %c0_i32_0 : i32, i32
  }
  func.func @transform_5(%arg0: i32) -> (i32, i32, i32) {
    %c0_i32 = arith.constant 0 : i32
    %c0_i32_0 = arith.constant 0 : i32
    %c0_i32_1 = arith.constant 0 : i32
    return %arg0, %c0_i32, %c0_i32_0 : i32, i32, i32
  }
}

</mosaic_0001>

<llo_original>
// kernel: tpu_custom_call.1
$region0: #{tpu_custom_call.1}
  #allocation0 [shape = 'u32[]', space=smem, size = 0x4, offset = 0x4, fixed_abs, tag = 'smem constant byte address 0x4 - core index']
  #allocation1 [shape = 'u32[144,128]{1,0:T(1,128)}', space=vmem, size = 0x12000, scoped, tag = 'internal scratch']
  %s0 = inlined_call_operand.hbm [shape: f32[2,8,256], index: 0, kind: input, shape index: {}]
  %s1 = inlined_call_operand.vmem [shape: f32[8,1], index: 1, kind: input, shape index: {}]
  %s2 = inlined_call_operand.vmem [shape: f32[8,1], index: 2, kind: input, shape index: {}]
  %s3 = inlined_call_operand.vmem [shape: f32[8,8], index: 3, kind: input, shape index: {}]
  %s4 = inlined_call_operand.vmem [shape: f32[8,1], index: 4, kind: input, shape index: {}]
  %s5 = inlined_call_operand.hbm [shape: f32[2,8,256], index: 5, kind: output, shape index: {}]
  %s6 = sld [smem:[#allocation0]]
  $region57: #{tpu_custom_call.1} parent=0
    _
  %s8 = ssub.s32 1, %s6
  %s9 = scalar_select 0, %s8, %s6
  $region1: #{tpu_custom_call.1} parent=0
    #allocation2 [shape = 'u8[16384]{0}', space=vmem, size = 0x4000, scoped, tag = 'input window, operand 0']
    #allocation3 [shape = 's32[2]{0}', space=sflag, size = 0x8, scoped, tag = 'scoped memory for tpu_custom_call.1']
    #allocation4 [shape = 's32[2]{0}', space=sflag, size = 0x8, scoped, tag = 'scoped memory for tpu_custom_call.1']
    #allocation5 [shape = 'u8[16384]{0}', space=vmem, size = 0x4000, scoped, tag = 'output window, operand 0']
    %10 = vsyncpa [#allocation3], 0
    %s11 = scalar_lea.sflag [#allocation3], 1
    %12 = vsyncpa %s11, 0
    %13 = vsyncpa [#allocation4], 0
    %s14 = scalar_lea.sflag [#allocation4], 1
    %15 = vsyncpa %s14, 0
    loop: start=0, step=1, limit=4
    $region2: #{tpu_custom_call.1} parent=1 // loop_pre_header
      _
    $region3: #{tpu_custom_call.1} parent=1 // loop_header
      %s17 = sphi 0, %s21
      %p18 = scmp.ge.s32.totalorder %s17, 4
      %s27 = sphi 0, %s29
      %s30 = sphi 0, %s27
      %s31 = sphi 0, %s30
      %s47 = sphi 0, %s31
      %s51 = sphi 0, %s51
      %s53 = sphi 0, %s51
      %s54 = sphi 0, %s53
      %s68 = sphi 0, %s54
      %s72 = sphi 0, %s72
      %s74 = sphi 0, %s72
      %s75 = sphi 0, %s74
      %s89 = sphi 0, %s75
      %s93 = sphi 0, %s93
      %s95 = sphi 0, %s93
      %s96 = sphi 0, %s95
      %s110 = sphi 0, %s96
      %s114 = sphi 0, %s114
      %s116 = sphi 0, %s114
      %s117 = sphi 0, %s116
      %s131 = sphi 0, %s117
      %s137 = sphi 0, %s139
      %s140 = sphi 0, %s137
      %s141 = sphi 0, %s140
      %s157 = sphi 0, %s141
    $region4: #{tpu_custom_call.1} parent=1 // loop_header_branch
      %20 = sbr.rel (%p18) target = $region8
    $region5: #{tpu_custom_call.1} parent=1 // loop_body
      %s22 = ssub.s32 %s17, 1
      %s23 = ssub.s32 %s17, 2
      %s24 = sadd.s32 %s17, 1
      %s25 = ssub.s32 %s17, %s24
      %p26 = scmp.eq.s32.totalorder %s25, 0
      %s28 = sadd.s32 %s27, 1
      %s29 = scalar_select %p26, %s27, %s28
      %p32 = pneg %p26
      %p33 = scmp.eq.s32.totalorder %s17, 1
      %p34 = por %p32, %p33
      %p35 = scmp.ne.s32.totalorder %s27, %s30
      %p36 = scmp.eq.s32.totalorder %s17, 0
      %p37 = por %p35, %p36
      %p38 = scmp.ne.s32.totalorder %s27, %s30
      %p39 = scmp.eq.s32.totalorder %s22, 1
      %p40 = por %p38, %p39
      %p41 = scmp.ne.s32.totalorder %s30, %s31
      %p42 = scmp.eq.s32.totalorder %s22, 0
      %p43 = por %p41, %p42
      %p44 = scmp.ne.s32.totalorder %s30, %s31
      %p45 = scmp.eq.s32.totalorder %s23, 1
      %p46 = por %p44, %p45
      %p48 = scmp.ne.s32.totalorder %s31, %s47
      %p49 = scmp.eq.s32.totalorder %s23, 0
      %p50 = por %p48, %p49
      %s52 = sadd.s32 %s51, 1
      %p55 = scmp.eq.s32.totalorder %s17, 1
      %p56 = scmp.ne.s32.totalorder %s51, %s53
      %p57 = scmp.eq.s32.totalorder %s17, 0
      %p58 = por %p56, %p57
      %p59 = scmp.ne.s32.totalorder %s51, %s53
      %p60 = scmp.eq.s32.totalorder %s22, 1
      %p61 = por %p59, %p60
      %p62 = scmp.ne.s32.totalorder %s53, %s54
      %p63 = scmp.eq.s32.totalorder %s22, 0
      %p64 = por %p62, %p63
      %p65 = scmp.ne.s32.totalorder %s53, %s54
      %p66 = scmp.eq.s32.totalorder %s23, 1
      %p67 = por %p65, %p66
      %p69 = scmp.ne.s32.totalorder %s54, %s68
      %p70 = scmp.eq.s32.totalorder %s23, 0
      %p71 = por %p69, %p70
      %s73 = sadd.s32 %s72, 1
      %p76 = scmp.eq.s32.totalorder %s17, 1
      %p77 = scmp.ne.s32.totalorder %s72, %s74
      %p78 = scmp.eq.s32.totalorder %s17, 0
      %p79 = por %p77, %p78
      %p80 = scmp.ne.s32.totalorder %s72, %s74
      %p81 = scmp.eq.s32.totalorder %s22, 1
      %p82 = por %p80, %p81
      %p83 = scmp.ne.s32.totalorder %s74, %s75
      %p84 = scmp.eq.s32.totalorder %s22, 0
      %p85 = por %p83, %p84
      %p86 = scmp.ne.s32.totalorder %s74, %s75
      %p87 = scmp.eq.s32.totalorder %s23, 1
      %p88 = por %p86, %p87
      %p90 = scmp.ne.s32.totalorder %s75, %s89
      %p91 = scmp.eq.s32.totalorder %s23, 0
      %p92 = por %p90, %p91
      %s94 = sadd.s32 %s93, 1
      %p97 = scmp.eq.s32.totalorder %s17, 1
      %p98 = scmp.ne.s32.totalorder %s93, %s95
      %p99 = scmp.eq.s32.totalorder %s17, 0
      %p100 = por %p98, %p99
      %p101 = scmp.ne.s32.totalorder %s93, %s95
      %p102 = scmp.eq.s32.totalorder %s22, 1
      %p103 = por %p101, %p102
      %p104 = scmp.ne.s32.totalorder %s95, %s96
      %p105 = scmp.eq.s32.totalorder %s22, 0
      %p106 = por %p104, %p105
      %p107 = scmp.ne.s32.totalorder %s95, %s96
      %p108 = scmp.eq.s32.totalorder %s23, 1
      %p109 = por %p107, %p108
      %p111 = scmp.ne.s32.totalorder %s96, %s110
      %p112 = scmp.eq.s32.totalorder %s23, 0
      %p113 = por %p111, %p112
      %s115 = sadd.s32 %s114, 1
      %p118 = scmp.eq.s32.totalorder %s17, 1
      %p119 = scmp.ne.s32.totalorder %s114, %s116
      %p120 = scmp.eq.s32.totalorder %s17, 0
      %p121 = por %p119, %p120
      %p122 = scmp.ne.s32.totalorder %s114, %s116
      %p123 = scmp.eq.s32.totalorder %s22, 1
      %p124 = por %p122, %p123
      %p125 = scmp.ne.s32.totalorder %s116, %s117
      %p126 = scmp.eq.s32.totalorder %s22, 0
      %p127 = por %p125, %p126
      %p128 = scmp.ne.s32.totalorder %s116, %s117
      %p129 = scmp.eq.s32.totalorder %s23, 1
      %p130 = por %p128, %p129
      %p132 = scmp.ne.s32.totalorder %s117, %s131
      %p133 = scmp.eq.s32.totalorder %s23, 0
      %p134 = por %p132, %p133
      %s135 = ssub.s32 %s17, %s24
      %p136 = scmp.eq.s32.totalorder %s135, 0
      %s138 = sadd.s32 %s137, 1
      %s139 = scalar_select %p136, %s137, %s138
      %p142 = pneg %p136
      %p143 = scmp.eq.s32.totalorder %s17, 1
      %p144 = por %p142, %p143
      %p145 = scmp.ne.s32.totalorder %s137, %s140
      %p146 = scmp.eq.s32.totalorder %s17, 0
      %p147 = por %p145, %p146
      %p148 = scmp.ne.s32.totalorder %s137, %s140
      %p149 = scmp.eq.s32.totalorder %s22, 1
      %p150 = por %p148, %p149
      %p151 = scmp.ne.s32.totalorder %s140, %s141
      %p152 = scmp.eq.s32.totalorder %s22, 0
      %p153 = por %p151, %p152
      %p154 = scmp.ne.s32.totalorder %s140, %s141
      %p155 = scmp.eq.s32.totalorder %s23, 1
      %p156 = por %p154, %p155
      %p158 = scmp.ne.s32.totalorder %s141, %s157
      %p159 = scmp.eq.s32.totalorder %s23, 0
      %p160 = por %p158, %p159
      %p161 = scmp.le.s32.totalorder 1, %s17
      %p162 = scmp.lt.s32.totalorder %s17, 3
      %p163 = pnand %p161, %p162
      %p164 = pneg %p163
      // Predicated region
      $region9: #{tpu_custom_call.1} parent=5 // pred_check
        _
      $region10: #{tpu_custom_call.1} parent=5 // pred_check_branch
        %166 = sbr.rel (%p163) target = $region12
      $region11: #{tpu_custom_call.1} parent=5 // pred_region
        %s167 = ssub.s32 %s17, 1
        // Predicated region
        $region13: #{tpu_custom_call.1} parent=11 // pred_check
          %p168 = pneg %p64
        $region14: #{tpu_custom_call.1} parent=11 // pred_check_branch
          %170 = sbr.rel (%p168) target = $region16
        $region15: #{tpu_custom_call.1} parent=11 // pred_region
          _
        $region16: #{tpu_custom_call.1} parent=11 // pred_fallthru
          _
        // Predicated region
        $region17: #{tpu_custom_call.1} parent=11 // pred_check
          %p171 = pneg %p85
        $region18: #{tpu_custom_call.1} parent=11 // pred_check_branch
          %173 = sbr.rel (%p171) target = $region20
        $region19: #{tpu_custom_call.1} parent=11 // pred_region
          _
        $region20: #{tpu_custom_call.1} parent=11 // pred_fallthru
          _
        // Predicated region
        $region21: #{tpu_custom_call.1} parent=11 // pred_check
          %p174 = pneg %p106
        $region22: #{tpu_custom_call.1} parent=11 // pred_check_branch
          %176 = sbr.rel (%p174) target = $region24
        $region23: #{tpu_custom_call.1} parent=11 // pred_region
          _
        $region24: #{tpu_custom_call.1} parent=11 // pred_fallthru
          _
        // Predicated region
        $region25: #{tpu_custom_call.1} parent=11 // pred_check
          %p177 = pneg %p127
        $region26: #{tpu_custom_call.1} parent=11 // pred_check_branch
          %179 = sbr.rel (%p177) target = $region28
        $region27: #{tpu_custom_call.1} parent=11 // pred_region
          _
        $region28: #{tpu_custom_call.1} parent=11 // pred_fallthru
          _
      $region12: #{tpu_custom_call.1} parent=5 // pred_fallthru
        _
      %p180 = scmp.lt.s32.totalorder %s17, 2
      // Predicated region
      $region29: #{tpu_custom_call.1} parent=5 // pred_check
        %p181 = pneg %p180
      $region30: #{tpu_custom_call.1} parent=5 // pred_check_branch
        %183 = sbr.rel (%p181) target = $region32
      $region31: #{tpu_custom_call.1} parent=5 // pred_region
        // Predicated region
        $region33: #{tpu_custom_call.1} parent=31 // pred_check
          %p184 = pneg %p37
        $region34: #{tpu_custom_call.1} parent=31 // pred_check_branch
          %186 = sbr.rel (%p184) target = $region36
        $region35: #{tpu_custom_call.1} parent=31 // pred_region
          %s187 = sand.u32 %s27, 1
          %s188 = scalar_lea.sflag [#allocation3], %s187
          %s189 = sand.u32 %s27, 1
          %s190 = smul.addr %s189, 16
          %s191 = scalar_lea.vmem [#allocation2], %s190
          %s193 = ssub.s32 256, 256
          %194 = vsyncadd %s188, %s193
          %s195 = smul.addr %s17, 2
          %s196 = smul.addr %s195, 128
          %s197 = scalar_lea.hbm %s0, %s196
          %s199 = sshll.u32 %s191, 4
          %s200 = int_to_ptr.vmem [resolvable:$true] %s199
          %202 = dma.hbm_to_vmem [thread:$0]  %s197, 256, %s200, %s188
        $region36: #{tpu_custom_call.1} parent=31 // pred_fallthru
          _
      $region32: #{tpu_custom_call.1} parent=5 // pred_fallthru
        _
      %p203 = scmp.le.s32.totalorder 1, %s17
      %p204 = scmp.lt.s32.totalorder %s17, 3
      %p205 = pnand %p203, %p204
      %p206 = pneg %p205
      // Predicated region
      $region37: #{tpu_custom_call.1} parent=5 // pred_check
        _
      $region38: #{tpu_custom_call.1} parent=5 // pred_check_branch
        %208 = sbr.rel (%p205) target = $region40
      $region39: #{tpu_custom_call.1} parent=5 // pred_region
        %s209 = ssub.s32 %s17, 1
        %s210 = sand.u32 %s30, 1
        %s211 = scalar_lea.sflag [#allocation3], %s210
        %s212 = sand.u32 %s30, 1
        %s213 = smul.addr %s212, 16
        %s214 = scalar_lea.vmem [#allocation2], %s213
        // Predicated region
        $region41: #{tpu_custom_call.1} parent=39 // pred_check
          %p215 = pneg %p43
        $region42: #{tpu_custom_call.1} parent=39 // pred_check_branch
          %217 = sbr.rel (%p215) target = $region44
        $region43: #{tpu_custom_call.1} parent=39 // pred_region
          %218 = dma.done %s211, 256
        $region44: #{tpu_custom_call.1} parent=39 // pred_fallthru
          _
        %s219 = sand.u32 %s30, 1
        %s220 = scalar_lea.sflag [#allocation3], %s219
        %s221 = sand.u32 %s30, 1
        %s222 = smul.addr %s221, 16
        %s223 = scalar_lea.vmem [#allocation2], %s222
        %p224 = pneg %p43
        %p225 = pneg %p40
        %p226 = pneg %p64
        %p227 = pneg %p61
        %p228 = pneg %p85
        %p229 = pneg %p82
        %p230 = pneg %p106
        %p231 = pneg %p103
        %p232 = pneg %p127
        %p233 = pneg %p124
        %p234 = pneg %p153
        %p235 = pneg %p150
        %s236 = sand.u32 %s140, 1
        %s237 = scalar_lea.sflag [#allocation4], %s236
        %s238 = sand.u32 %s140, 1
        %s239 = smul.addr %s238, 16
        %s240 = scalar_lea.vmem [#allocation5], %s239
        %v241 = vld [vmem:[%s214] sm:$0xff]
        %v242 = vld [vmem:[%s214 + $0x8] sm:$0xff]
        %v243 = vadd.f32 %v241, %v242
        %244 = vadd.xlane.f32.xlu0 %v243
        %v245 = vpop.xlane.xlu0 %244
        %v246 = vmul.f32 %v241, %v241
        %v247 = vmul.f32 %v242, %v242
        %v248 = vadd.f32 %v246, %v247
        %249 = vadd.xlane.f32.xlu0 %v248
        %v250 = vpop.xlane.xlu0 %249
        %v251 = vld [vmem:[%s1] sm:$0xff]
        %v252 = vld [vmem:[%s2] sm:$0xff]
        %vm253 = vcmask 1043456
        %v254 = vsel %vm253, %v245, 0.0
        %v255 = vrot.slane %v254, 4
        %v256 = vadd.f32 %v254, %v255
        %v257 = vrot.slane %v256, 2
        %v258 = vadd.f32 %v256, %v257
        %v259 = vrot.slane %v258, 1
        %v260 = vadd.f32 %v258, %v259
        %v261 = vmul.f32 %v260, 0.0009765625
        %v262 = vsel %vm253, %v250, 0.0
        %v263 = vrot.slane %v262, 4
        %v264 = vadd.f32 %v262, %v263
        %v265 = vrot.slane %v264, 2
        %v266 = vadd.f32 %v264, %v265
        %v267 = vrot.slane %v266, 1
        %v268 = vadd.f32 %v266, %v267
        %v269 = vmul.f32 %v268, 0.0009765625
        %v270 = vmul.f32 %v261, %v261
        %v271 = vsub.f32 %v269, %v270
        %v272 = vadd.f32 %v271, 1e-05
        %v273 = vrsqrt.pop %v272
        %v274 = vmul.f32 %v251, %v273
        %v275 = vmul.f32 %v261, %v274
        %v276 = vsub.f32 %v252, %v275
        %v278 = vrot.slane %v245, 4
        %v280 = vsel %vm253, %v278, 0.0
        %v281 = vrot.slane %v280, 4
        %v282 = vadd.f32 %v280, %v281
        %v283 = vrot.slane %v282, 2
        %v284 = vadd.f32 %v282, %v283
        %v285 = vrot.slane %v284, 1
        %v286 = vadd.f32 %v284, %v285
        %v287 = vmul.f32 %v286, 0.0009765625
        %v289 = vrot.slane %v250, 4
        %v291 = vsel %vm253, %v289, 0.0
        %v292 = vrot.slane %v291, 4
        %v293 = vadd.f32 %v291, %v292
        %v294 = vrot.slane %v293, 2
        %v295 = vadd.f32 %v293, %v294
        %v296 = vrot.slane %v295, 1
        %v297 = vadd.f32 %v295, %v296
        %v298 = vmul.f32 %v297, 0.0009765625
        %v299 = vmul.f32 %v287, %v287
        %v300 = vsub.f32 %v298, %v299
        %v301 = vadd.f32 %v300, 1e-05
        %v302 = vrsqrt.pop %v301
        %v303 = vmul.f32 %v251, %v302
        %v304 = vmul.f32 %v287, %v303
        %v305 = vsub.f32 %v252, %v304
        %v306 = vsel %vm253, %v274, %v303
        %v307 = vsel %vm253, %v276, %v305
        %309 = vset.pattern.permute.xlu0 0
        %310 = vperm.xlu0 %309, %v306
        %v311 = vpop.permute.xlu0 %310
        %v313 = vmul.f32 %v241, %v311
        %v314 = vmul.f32 %v242, %v311
        %316 = vset.pattern.permute.xlu0 0
        %317 = vperm.xlu0 %316, %v307
        %v318 = vpop.permute.xlu0 %317
        %v320 = vadd.f32 %v313, %v318
        %v321 = vadd.f32 %v314, %v318
        %v322 = vld [vmem:[%s3] sm:$0xff]
        %v323 = vld [vmem:[%s4] sm:$0xff]
        %325 = vset.pattern.permute.xlu0 0
        %326 = vperm.xlu0 %325, %v323
        %v327 = vpop.permute.xlu0 %326
        %vm329 = vcmask 64512
        %v331 = vsel %vm329, %v322, 0
        %333 = vmatprep.subr.mxu0 %v321
        %334 = vmatpush1.msra.mxu0 %v320
        %335 = vmatprep.subr.mxu0 0.0
        %336 = vmatpush1.msra.mxu0 0.0
        %337 = vmatprep.subr.mxu0 0.0
        %338 = vmatpush1.msra.mxu0 0.0
        %339 = vmatprep.subr.mxu0 0.0
        %340 = vmatpush1.msra.mxu0 0.0
        %341 = vmatprep.subr.mxu0 0.0
        %342 = vmatpush1.msra.mxu0 0.0
        %343 = vmatprep.subr.mxu0 0.0
        %344 = vmatpush1.msra.mxu0 0.0
        %345 = vmatprep.subr.mxu0 0.0
        %346 = vmatpush1.msra.mxu0 0.0
        %347 = vmatprep.subr.mxu0 0.0
        %348 = vmatpush1.msra.mxu0 0.0
        %349 = vmatprep.subr.mxu0 0.0
        %350 = vmatpush1.msra.mxu0 0.0
        %351 = vmatprep.subr.mxu0 0.0
        %352 = vmatpush1.msra.mxu0 0.0
        %353 = vmatprep.subr.mxu0 0.0
        %354 = vmatpush1.msra.mxu0 0.0
        %355 = vmatprep.subr.mxu0 0.0
        %356 = vmatpush1.msra.mxu0 0.0
        %357 = vmatprep.subr.mxu0 0.0
        %358 = vmatpush1.msra.mxu0 0.0
        %359 = vmatprep.subr.mxu0 0.0
        %360 = vmatpush1.msra.mxu0 0.0
        %361 = vmatprep.subr.mxu0 0.0
        %362 = vmatpush1.msra.mxu0 0.0
        %363 = vmatprep.subr.mxu0 0.0
        %364 = vmatpush1.msra.mxu0 0.0
        %365 = vmatprep.subr.mxu0 0.0
        %366 = vmatpush1.msra.mxu0 0.0
        %367 = vmatprep.subr.mxu0 0.0
        %368 = vmatpush1.msra.mxu0 0.0
        %369 = vmatprep.subr.mxu0 0.0
        %370 = vmatpush1.msra.mxu0 0.0
        %371 = vmatprep.subr.mxu0 0.0
        %372 = vmatpush1.msra.mxu0 0.0
        %373 = vmatprep.subr.mxu0 0.0
        %374 = vmatpush1.msra.mxu0 0.0
        %375 = vmatprep.subr.mxu0 0.0
        %376 = vmatpush1.msra.mxu0 0.0
        %377 = vmatprep.subr.mxu0 0.0
        %378 = vmatpush1.msra.mxu0 0.0
        %379 = vmatprep.subr.mxu0 0.0
        %380 = vmatpush1.msra.mxu0 0.0
        %381 = vmatprep.subr.mxu0 0.0
        %382 = vmatpush1.msra.mxu0 0.0
        %383 = vmatprep.subr.mxu0 0.0
        %384 = vmatpush1.msra.mxu0 0.0
        %385 = vmatprep.subr.mxu0 0.0
        %386 = vmatpush1.msra.mxu0 0.0
        %387 = vmatprep.subr.mxu0 0.0
        %388 = vmatpush1.msra.mxu0 0.0
        %389 = vmatprep.subr.mxu0 0.0
        %390 = vmatpush1.msra.mxu0 0.0
        %391 = vmatprep.subr.mxu0 0.0
        %392 = vmatpush1.msra.mxu0 0.0
        %393 = vmatprep.subr.mxu0 0.0
        %394 = vmatpush1.msra.mxu0 0.0
        %395 = vmatprep.subr.mxu0 0.0
        %396 = vmatpush1.msra.mxu0 0.0
        %397 = vmatprep.mubr.f32.mxu0 0.0
        %398 = vmatmul.mubr.f32.gmra.mrb[0].mxu0 %v331
        %v399 = vpop.f32.mrb[0].mxu0
        %v400 = vadd.f32 %v327, %v399
        %v401 = vpop.f32.mrb[0].mxu0
        %v402 = vadd.f32 %v327, %v401
        %403 = vdwg.mxu0
        %404 = vst [vmem:[%s240] sm:$0xff] %v400
        %405 = vst [vmem:[%s240 + $0x8] sm:$0xff] %v402
        %s406 = sand.u32 %s140, 1
        %s407 = scalar_lea.sflag [#allocation4], %s406
        %s408 = sand.u32 %s140, 1
        %s409 = smul.addr %s408, 16
        %s410 = scalar_lea.vmem [#allocation5], %s409
        // Predicated region
        $region45: #{tpu_custom_call.1} parent=39 // pred_check
          %p411 = pneg %p150
        $region46: #{tpu_custom_call.1} parent=39 // pred_check_branch
          %413 = sbr.rel (%p411) target = $region48
        $region47: #{tpu_custom_call.1} parent=39 // pred_region
          %s415 = ssub.s32 256, 256
          %416 = vsyncadd %s407, %s415
          %s417 = smul.addr %s22, 2
          %s418 = smul.addr %s417, 128
          %s419 = scalar_lea.hbm %s5, %s418
          %s421 = sshll.u32 %s410, 4
          %s422 = int_to_ptr.vmem [resolvable:$true] %s421
          %424 = dma.vmem_to_hbm [thread:$0]  %s422, 256, %s419, %s407
        $region48: #{tpu_custom_call.1} parent=39 // pred_fallthru
          _
      $region40: #{tpu_custom_call.1} parent=5 // pred_fallthru
        _
      %p425 = scmp.le.s32.totalorder 2, %s17
      // Predicated region
      $region49: #{tpu_custom_call.1} parent=5 // pred_check
        %p426 = pneg %p425
      $region50: #{tpu_custom_call.1} parent=5 // pred_check_branch
        %428 = sbr.rel (%p426) target = $region52
      $region51: #{tpu_custom_call.1} parent=5 // pred_region
        %s429 = ssub.s32 %s17, 2
        // Predicated region
        $region53: #{tpu_custom_call.1} parent=51 // pred_check
          %p430 = pneg %p156
        $region54: #{tpu_custom_call.1} parent=51 // pred_check_branch
          %432 = sbr.rel (%p430) target = $region56
        $region55: #{tpu_custom_call.1} parent=51 // pred_region
          %s433 = sand.u32 %s141, 1
          %s434 = scalar_lea.sflag [#allocation4], %s433
          %s435 = sand.u32 %s141, 1
          %s436 = smul.addr %s435, 16
          %s437 = scalar_lea.vmem [#allocation5], %s436
          %438 = dma.done %s434, 256
        $region56: #{tpu_custom_call.1} parent=51 // pred_fallthru
          _
      $region52: #{tpu_custom_call.1} parent=5 // pred_fallthru
        _
    $region6: #{tpu_custom_call.1} parent=1 // loop_footer
      %s21 = sadd.s32 1, %s17
    $region7: #{tpu_custom_call.1} parent=1 // loop_footer_branch
      %16 = sbr.rel target = $region3
    $region8: #{tpu_custom_call.1} parent=1 // loop_exit
      _
    %439 = vsyncpa [#allocation3], 1
    %s440 = scalar_lea.sflag [#allocation3], 1
    %441 = vsyncpa %s440, 1
    %442 = vsyncpa [#allocation4], 1
    %s443 = scalar_lea.sflag [#allocation4], 1
    %444 = vsyncpa %s443, 1

</llo_original>
